<compile_context>
chip_gen: v7x
topology: tpu7x:2x2x1
jax: 0.10.0
libtpu: 0.0.40
codegen_flags: <defaults>
</compile_context>

<pallas_src>
import numpy as np
import jax
import jax.numpy as jnp
from jax.experimental import pallas as pl
from jax.experimental.pallas import tpu as pltpu


# ----------------------------- Pallas kernel ------------------------------ #
def _vnet_kernel(x_ref, w1_ref, b1_ref, w2_ref, b2_ref, o_ref):
    # x_ref : (TM, IN)   one batch tile
    # w1_ref: (IN, H1)   resident (constant index_map)
    # b1_ref: (1,  H1)
    # w2_ref: (H1, OUT)
    # b2_ref: (1,  OUT)
    # o_ref : (TM, OUT)
    x = x_ref[...]
    h = jnp.dot(x, w1_ref[...], preferred_element_type=jnp.float32) + b1_ref[...]
    h = jnp.maximum(h, 0.0)                                       # ReLU (VPU)
    z = jnp.dot(h, w2_ref[...], preferred_element_type=jnp.float32) + b2_ref[...]
    o_ref[...] = (1.0 / (1.0 + jnp.exp(-z))).astype(o_ref.dtype)  # sigmoid (EUP)


def vnet_forward_pallas(x, w1_t, b1, w2_t, b2, *, tm=128):
    """Fused VNet forward.

    x    : (B, IN)   f32
    w1_t : (IN, H1)  f32   (transposed PyTorch linear1.weight)
    b1   : (H1,)     f32
    w2_t : (H1, OUT) f32   (transposed PyTorch linear2.weight)
    b2   : (OUT,)    f32
    returns (B, OUT) f32
    """
    B, IN = x.shape
    H1 = w1_t.shape[1]
    OUT = w2_t.shape[1]

    # Batch tile: multiple of 8 sublanes unless it spans the whole batch.
    tm = min(tm, B)
    if tm != B:
        tm = max(8, (tm // 8) * 8)
    Bp = -(-B // tm) * tm
    if Bp != B:
        x = jnp.pad(x, ((0, Bp - B), (0, 0)))

    b1_2d = b1.reshape(1, H1)
    b2_2d = b2.reshape(1, OUT)

    out = pl.pallas_call(
        _vnet_kernel,
        out_shape=jax.ShapeDtypeStruct((Bp, OUT), x.dtype),
        grid=(Bp // tm,),
        in_specs=[
            pl.BlockSpec((tm, IN), lambda i: (i, 0)),    # x tile
            pl.BlockSpec((IN, H1), lambda i: (0, 0)),    # w1 (resident)
            pl.BlockSpec((1, H1), lambda i: (0, 0)),     # b1 (resident)
            pl.BlockSpec((H1, OUT), lambda i: (0, 0)),   # w2 (resident)
            pl.BlockSpec((1, OUT), lambda i: (0, 0)),    # b2 (resident)
        ],
        out_specs=pl.BlockSpec((tm, OUT), lambda i: (i, 0)),
        compiler_params=pltpu.CompilerParams(
            dimension_semantics=("parallel",)),
    )(x, w1_t, b1_2d, w2_t, b2_2d)

    return out[:B]


# ------------------------------- JAX glue --------------------------------- #
class MetaLinearParams:
    """Parameters of a PyTorch nn.Linear (MetaLinear), stored transposed
    as (in_features, out_features) so the kernel can use plain x @ W dots."""

    def __init__(self, key, in_features, out_features):
        kw, kb = jax.random.split(key)
        bound = 1.0 / float(np.sqrt(in_features))     # nn.Linear default init range
        self.weight_t = jax.random.uniform(
            kw, (in_features, out_features), jnp.float32, -bound, bound)
        self.bias = jax.random.uniform(
            kb, (out_features,), jnp.float32, -bound, bound)


class VNetPallas:
    """Pallas/JAX equivalent of the PyTorch `VNet` module."""

    def __init__(self, input, hidden1, output, key):
        k1, k2 = jax.random.split(key)
        self.linear1 = MetaLinearParams(k1, input, hidden1)
        self.linear2 = MetaLinearParams(k2, hidden1, output)

    def __call__(self, x):
        return vnet_forward_pallas(
            x,
            self.linear1.weight_t, self.linear1.bias,
            self.linear2.weight_t, self.linear2.bias,
        )


# --------------------------------- main ------------------------------------ #
if __name__ == "__main__":
    # Shapes consistent with VNet usage (meta-weight-net: per-sample scalar in,
    # scalar weight out).  Hidden=128 keeps the intermediate lane-dense; OUT=1
    # is inherent to the module's semantics.
    B, IN, H1, OUT = 256, 32, 128, 1

    key = jax.random.PRNGKey(0)
    kx, kp = jax.random.split(key)
    x = jax.random.normal(kx, (B, IN), dtype=jnp.float32)

    net = VNetPallas(IN, H1, OUT, kp)
    out = jax.block_until_ready(net(x))

    # Pure-JAX reference of the same forward pass.
    h_ref = jnp.maximum(x @ net.linear1.weight_t + net.linear1.bias, 0.0)
    ref = jax.nn.sigmoid(h_ref @ net.linear2.weight_t + net.linear2.bias)

    assert out.shape == (B, OUT)
    np.testing.assert_allclose(np.asarray(out), np.asarray(ref),
                               rtol=1e-4, atol=1e-4)
    print("KERNEL_OK")
</pallas_src>

<mosaic_0001>
module attributes {stable_mosaic.version = 11 : i64} {
  func.func @_vnet_kernel(%arg0: i32, %arg1: memref<128x32xf32, #tpu.memory_space<vmem>>, %arg2: memref<32x128xf32, #tpu.memory_space<vmem>>, %arg3: memref<1x128xf32, #tpu.memory_space<vmem>>, %arg4: memref<128x1xf32, #tpu.memory_space<vmem>>, %arg5: memref<1x1xf32, #tpu.memory_space<vmem>>, %arg6: memref<128x1xf32, #tpu.memory_space<vmem>>) attributes {dimension_semantics = [#tpu.dimension_semantics<parallel>], iteration_bounds = array<i64: 2>, scalar_prefetch = 0 : i64, scratch_operands = 0 : i64, tpu.core_type = #tpu.core_type<tc>, window_params = [{transform_indices = @transform_0, window_bounds = array<i64: 128, 32>}, {pipeline_mode = #tpu.pipeline_mode<synchronous>, transform_indices = @transform_1, window_bounds = array<i64: 32, 128>}, {pipeline_mode = #tpu.pipeline_mode<synchronous>, transform_indices = @transform_2, window_bounds = array<i64: 1, 128>}, {pipeline_mode = #tpu.pipeline_mode<synchronous>, transform_indices = @transform_3, window_bounds = array<i64: 128, 1>}, {pipeline_mode = #tpu.pipeline_mode<synchronous>, transform_indices = @transform_4, window_bounds = array<i64: 1, 1>}, {transform_indices = @transform_5, window_bounds = array<i64: 128, 1>}]} {
    %c0 = arith.constant 0 : index
    %c0_0 = arith.constant 0 : index
    %0 = vector.load %arg1[%c0, %c0_0] : memref<128x32xf32, #tpu.memory_space<vmem>>, vector<128x32xf32>
    %c0_1 = arith.constant 0 : index
    %c0_2 = arith.constant 0 : index
    %1 = vector.load %arg2[%c0_1, %c0_2] : memref<32x128xf32, #tpu.memory_space<vmem>>, vector<32x128xf32>
    %cst = arith.constant dense<0.000000e+00> : vector<128x128xf32>
    %2 = tpu.matmul %0, %1, %cst {dimension_numbers = #tpu.dot_dimension_numbers<[1], [0], [0], [1], [0, 0, 1, 1], [], []>} : vector<128x32xf32>, vector<32x128xf32>, vector<128x128xf32> -> vector<128x128xf32>
    %c0_3 = arith.constant 0 : index
    %c0_4 = arith.constant 0 : index
    %3 = vector.load %arg3[%c0_3, %c0_4] : memref<1x128xf32, #tpu.memory_space<vmem>>, vector<1x128xf32>
    %4 = vector.broadcast %3 : vector<1x128xf32> to vector<128x128xf32>
    %5 = arith.addf %2, %4 : vector<128x128xf32>
    %cst_5 = arith.constant 0.000000e+00 : f32
    %6 = vector.broadcast %cst_5 : f32 to vector<128x128xf32>
    %7 = arith.maximumf %5, %6 : vector<128x128xf32>
    %c0_6 = arith.constant 0 : index
    %c0_7 = arith.constant 0 : index
    %8 = vector.load %arg4[%c0_6, %c0_7] : memref<128x1xf32, #tpu.memory_space<vmem>>, vector<128x1xf32>
    %cst_8 = arith.constant dense<0.000000e+00> : vector<128x1xf32>
    %9 = tpu.matmul %7, %8, %cst_8 {dimension_numbers = #tpu.dot_dimension_numbers<[1], [0], [0], [1], [0, 0, 1, 1], [], []>} : vector<128x128xf32>, vector<128x1xf32>, vector<128x1xf32> -> vector<128x1xf32>
    %c0_9 = arith.constant 0 : index
    %c0_10 = arith.constant 0 : index
    %10 = vector.load %arg5[%c0_9, %c0_10] : memref<1x1xf32, #tpu.memory_space<vmem>>, vector<1x1xf32>
    %11 = vector.broadcast %10 : vector<1x1xf32> to vector<128x1xf32>
    %12 = arith.addf %9, %11 : vector<128x1xf32>
    %cst_11 = arith.constant 0.000000e+00 : f32
    %13 = vector.broadcast %cst_11 : f32 to vector<128x1xf32>
    %14 = arith.subf %13, %12 : vector<128x1xf32>
    %15 = math.exp %14 : vector<128x1xf32>
    %cst_12 = arith.constant 1.000000e+00 : f32
    %16 = vector.broadcast %cst_12 : f32 to vector<128x1xf32>
    %17 = arith.addf %16, %15 : vector<128x1xf32>
    %cst_13 = arith.constant 1.000000e+00 : f32
    %18 = vector.broadcast %cst_13 : f32 to vector<128x1xf32>
    %19 = arith.divf %18, %17 : vector<128x1xf32>
    %c0_14 = arith.constant 0 : index
    %c0_15 = arith.constant 0 : index
    %20 = vector.load %arg6[%c0_14, %c0_15] : memref<128x1xf32, #tpu.memory_space<vmem>>, vector<128x1xf32>
    tpu.vector_store %arg6[%c0_14, %c0_15], %19 {strides = array<i32>} : memref<128x1xf32, #tpu.memory_space<vmem>>, vector<128x1xf32>,
    return
  }
  func.func @transform_0(%arg0: i32) -> (i32, i32) {
    %c0_i32 = arith.constant 0 : i32
    %c0_i32_0 = arith.constant 0 : i32
    return %arg0, %c0_i32 : i32, i32
  }
  func.func @transform_1(%arg0: i32) -> (i32, i32) {
    %c0_i32 = arith.constant 0 : i32
    %c0_i32_0 = arith.constant 0 : i32
    %c0_i32_1 = arith.constant 0 : i32
    return %c0_i32, %c0_i32_0 : i32, i32
  }
  func.func @transform_2(%arg0: i32) -> (i32, i32) {
    %c0_i32 = arith.constant 0 : i32
    %c0_i32_0 = arith.constant 0 : i32
    %c0_i32_1 = arith.constant 0 : i32
    return %c0_i32, %c0_i32_0 : i32, i32
  }
  func.func @transform_3(%arg0: i32) -> (i32, i32) {
    %c0_i32 = arith.constant 0 : i32
    %c0_i32_0 = arith.constant 0 : i32
    %c0_i32_1 = arith.constant 0 : i32
    return %c0_i32, %c0_i32_0 : i32, i32
  }
  func.func @transform_4(%arg0: i32) -> (i32, i32) {
    %c0_i32 = arith.constant 0 : i32
    %c0_i32_0 = arith.constant 0 : i32
    %c0_i32_1 = arith.constant 0 : i32
    return %c0_i32, %c0_i32_0 : i32, i32
  }
  func.func @transform_5(%arg0: i32) -> (i32, i32) {
    %c0_i32 = arith.constant 0 : i32
    %c0_i32_0 = arith.constant 0 : i32
    return %arg0, %c0_i32 : i32, i32
  }
}

</mosaic_0001>

<llo_original>
// kernel: tpu_custom_call.1
$region0: #{tpu_custom_call.1}
  #allocation0 [shape = 'u32[]', space=smem, size = 0x4, offset = 0x4, fixed_abs, tag = 'smem constant byte address 0x4 - core index']
  #allocation1 [shape = 'u32[144,128]{1,0:T(1,128)}', space=vmem, size = 0x12000, scoped, tag = 'internal scratch']
  #allocation2 [shape = 'f32[1,1]{1,0:T(1,128)S(1)}', space=vmem, size = 0x200, scoped, tag = 'scoped memory for tpu_custom_call.1']
  %s0 = inlined_call_operand.vmem [shape: f32[256,32], index: 0, kind: input, shape index: {}]
  %s1 = inlined_call_operand.vmem [shape: f32[32,128], index: 1, kind: input, shape index: {}]
  %s2 = inlined_call_operand.vmem [shape: f32[1,128], index: 2, kind: input, shape index: {}]
  %s3 = inlined_call_operand.vmem [shape: f32[128,1], index: 3, kind: input, shape index: {}]
  %s4 = inlined_call_operand.<no memory space> [shape: f32[1,1], index: 4, kind: input, shape index: {}]
  %s5 = inlined_call_operand.vmem [shape: f32[256,1], index: 5, kind: output, shape index: {}]
  %s6 = sld [smem:[#allocation0]]
  $region53: #{tpu_custom_call.1} parent=0
    _
  %s8 = ssub.s32 1, %s6
  %s9 = scalar_select 0, %s8, %s6
  %v10 = vstv %s4
  %11 = vst [vmem:[#allocation2] sm:$0x1] %v10
  loop: start=0, step=1, limit=4
  $region2: #{tpu_custom_call.1} parent=0 // loop_pre_header
    _
  $region3: #{tpu_custom_call.1} parent=0 // loop_header
    %s13 = sphi 0, %s17
    %p14 = scmp.ge.s32.totalorder %s13, 4
    %s23 = sphi 0, %s25
    %s26 = sphi 0, %s23
    %s27 = sphi 0, %s26
    %s43 = sphi 0, %s27
    %s47 = sphi 0, %s47
    %s49 = sphi 0, %s47
    %s50 = sphi 0, %s49
    %s64 = sphi 0, %s50
    %s68 = sphi 0, %s68
    %s70 = sphi 0, %s68
    %s71 = sphi 0, %s70
    %s85 = sphi 0, %s71
    %s89 = sphi 0, %s89
    %s91 = sphi 0, %s89
    %s92 = sphi 0, %s91
    %s106 = sphi 0, %s92
    %s110 = sphi 0, %s110
    %s112 = sphi 0, %s110
    %s113 = sphi 0, %s112
    %s127 = sphi 0, %s113
    %s133 = sphi 0, %s135
    %s136 = sphi 0, %s133
    %s137 = sphi 0, %s136
    %s153 = sphi 0, %s137
  $region4: #{tpu_custom_call.1} parent=0 // loop_header_branch
    %16 = sbr.rel (%p14) target = $region8
  $region5: #{tpu_custom_call.1} parent=0 // loop_body
    %s18 = ssub.s32 %s13, 1
    %s19 = ssub.s32 %s13, 2
    %s20 = sadd.s32 %s13, 1
    %s21 = ssub.s32 %s13, %s20
    %p22 = scmp.eq.s32.totalorder %s21, 0
    %s24 = sadd.s32 %s23, 1
    %s25 = scalar_select %p22, %s23, %s24
    %p28 = pneg %p22
    %p29 = scmp.eq.s32.totalorder %s13, 1
    %p30 = por %p28, %p29
    %p31 = scmp.ne.s32.totalorder %s23, %s26
    %p32 = scmp.eq.s32.totalorder %s13, 0
    %p33 = por %p31, %p32
    %p34 = scmp.ne.s32.totalorder %s23, %s26
    %p35 = scmp.eq.s32.totalorder %s18, 1
    %p36 = por %p34, %p35
    %p37 = scmp.ne.s32.totalorder %s26, %s27
    %p38 = scmp.eq.s32.totalorder %s18, 0
    %p39 = por %p37, %p38
    %p40 = scmp.ne.s32.totalorder %s26, %s27
    %p41 = scmp.eq.s32.totalorder %s19, 1
    %p42 = por %p40, %p41
    %p44 = scmp.ne.s32.totalorder %s27, %s43
    %p45 = scmp.eq.s32.totalorder %s19, 0
    %p46 = por %p44, %p45
    %s48 = sadd.s32 %s47, 1
    %p51 = scmp.eq.s32.totalorder %s13, 1
    %p52 = scmp.ne.s32.totalorder %s47, %s49
    %p53 = scmp.eq.s32.totalorder %s13, 0
    %p54 = por %p52, %p53
    %p55 = scmp.ne.s32.totalorder %s47, %s49
    %p56 = scmp.eq.s32.totalorder %s18, 1
    %p57 = por %p55, %p56
    %p58 = scmp.ne.s32.totalorder %s49, %s50
    %p59 = scmp.eq.s32.totalorder %s18, 0
    %p60 = por %p58, %p59
    %p61 = scmp.ne.s32.totalorder %s49, %s50
    %p62 = scmp.eq.s32.totalorder %s19, 1
    %p63 = por %p61, %p62
    %p65 = scmp.ne.s32.totalorder %s50, %s64
    %p66 = scmp.eq.s32.totalorder %s19, 0
    %p67 = por %p65, %p66
    %s69 = sadd.s32 %s68, 1
    %p72 = scmp.eq.s32.totalorder %s13, 1
    %p73 = scmp.ne.s32.totalorder %s68, %s70
    %p74 = scmp.eq.s32.totalorder %s13, 0
    %p75 = por %p73, %p74
    %p76 = scmp.ne.s32.totalorder %s68, %s70
    %p77 = scmp.eq.s32.totalorder %s18, 1
    %p78 = por %p76, %p77
    %p79 = scmp.ne.s32.totalorder %s70, %s71
    %p80 = scmp.eq.s32.totalorder %s18, 0
    %p81 = por %p79, %p80
    %p82 = scmp.ne.s32.totalorder %s70, %s71
    %p83 = scmp.eq.s32.totalorder %s19, 1
    %p84 = por %p82, %p83
    %p86 = scmp.ne.s32.totalorder %s71, %s85
    %p87 = scmp.eq.s32.totalorder %s19, 0
    %p88 = por %p86, %p87
    %s90 = sadd.s32 %s89, 1
    %p93 = scmp.eq.s32.totalorder %s13, 1
    %p94 = scmp.ne.s32.totalorder %s89, %s91
    %p95 = scmp.eq.s32.totalorder %s13, 0
    %p96 = por %p94, %p95
    %p97 = scmp.ne.s32.totalorder %s89, %s91
    %p98 = scmp.eq.s32.totalorder %s18, 1
    %p99 = por %p97, %p98
    %p100 = scmp.ne.s32.totalorder %s91, %s92
    %p101 = scmp.eq.s32.totalorder %s18, 0
    %p102 = por %p100, %p101
    %p103 = scmp.ne.s32.totalorder %s91, %s92
    %p104 = scmp.eq.s32.totalorder %s19, 1
    %p105 = por %p103, %p104
    %p107 = scmp.ne.s32.totalorder %s92, %s106
    %p108 = scmp.eq.s32.totalorder %s19, 0
    %p109 = por %p107, %p108
    %s111 = sadd.s32 %s110, 1
    %p114 = scmp.eq.s32.totalorder %s13, 1
    %p115 = scmp.ne.s32.totalorder %s110, %s112
    %p116 = scmp.eq.s32.totalorder %s13, 0
    %p117 = por %p115, %p116
    %p118 = scmp.ne.s32.totalorder %s110, %s112
    %p119 = scmp.eq.s32.totalorder %s18, 1
    %p120 = por %p118, %p119
    %p121 = scmp.ne.s32.totalorder %s112, %s113
    %p122 = scmp.eq.s32.totalorder %s18, 0
    %p123 = por %p121, %p122
    %p124 = scmp.ne.s32.totalorder %s112, %s113
    %p125 = scmp.eq.s32.totalorder %s19, 1
    %p126 = por %p124, %p125
    %p128 = scmp.ne.s32.totalorder %s113, %s127
    %p129 = scmp.eq.s32.totalorder %s19, 0
    %p130 = por %p128, %p129
    %s131 = ssub.s32 %s13, %s20
    %p132 = scmp.eq.s32.totalorder %s131, 0
    %s134 = sadd.s32 %s133, 1
    %s135 = scalar_select %p132, %s133, %s134
    %p138 = pneg %p132
    %p139 = scmp.eq.s32.totalorder %s13, 1
    %p140 = por %p138, %p139
    %p141 = scmp.ne.s32.totalorder %s133, %s136
    %p142 = scmp.eq.s32.totalorder %s13, 0
    %p143 = por %p141, %p142
    %p144 = scmp.ne.s32.totalorder %s133, %s136
    %p145 = scmp.eq.s32.totalorder %s18, 1
    %p146 = por %p144, %p145
    %p147 = scmp.ne.s32.totalorder %s136, %s137
    %p148 = scmp.eq.s32.totalorder %s18, 0
    %p149 = por %p147, %p148
    %p150 = scmp.ne.s32.totalorder %s136, %s137
    %p151 = scmp.eq.s32.totalorder %s19, 1
    %p152 = por %p150, %p151
    %p154 = scmp.ne.s32.totalorder %s137, %s153
    %p155 = scmp.eq.s32.totalorder %s19, 0
    %p156 = por %p154, %p155
    %p157 = scmp.le.s32.totalorder 1, %s13
    %p158 = scmp.lt.s32.totalorder %s13, 3
    %p159 = pnand %p157, %p158
    %p160 = pneg %p159
    // Predicated region
    $region9: #{tpu_custom_call.1} parent=5 // pred_check
      _
    $region10: #{tpu_custom_call.1} parent=5 // pred_check_branch
      %162 = sbr.rel (%p159) target = $region12
    $region11: #{tpu_custom_call.1} parent=5 // pred_region
      %s163 = ssub.s32 %s13, 1
      // Predicated region
      $region13: #{tpu_custom_call.1} parent=11 // pred_check
        %p164 = pneg %p60
      $region14: #{tpu_custom_call.1} parent=11 // pred_check_branch
        %166 = sbr.rel (%p164) target = $region16
      $region15: #{tpu_custom_call.1} parent=11 // pred_region
        _
      $region16: #{tpu_custom_call.1} parent=11 // pred_fallthru
        _
      // Predicated region
      $region17: #{tpu_custom_call.1} parent=11 // pred_check
        %p167 = pneg %p81
      $region18: #{tpu_custom_call.1} parent=11 // pred_check_branch
        %169 = sbr.rel (%p167) target = $region20
      $region19: #{tpu_custom_call.1} parent=11 // pred_region
        _
      $region20: #{tpu_custom_call.1} parent=11 // pred_fallthru
        _
      // Predicated region
      $region21: #{tpu_custom_call.1} parent=11 // pred_check
        %p170 = pneg %p102
      $region22: #{tpu_custom_call.1} parent=11 // pred_check_branch
        %172 = sbr.rel (%p170) target = $region24
      $region23: #{tpu_custom_call.1} parent=11 // pred_region
        _
      $region24: #{tpu_custom_call.1} parent=11 // pred_fallthru
        _
      // Predicated region
      $region25: #{tpu_custom_call.1} parent=11 // pred_check
        %p173 = pneg %p123
      $region26: #{tpu_custom_call.1} parent=11 // pred_check_branch
        %175 = sbr.rel (%p173) target = $region28
      $region27: #{tpu_custom_call.1} parent=11 // pred_region
        _
      $region28: #{tpu_custom_call.1} parent=11 // pred_fallthru
        _
    $region12: #{tpu_custom_call.1} parent=5 // pred_fallthru
      _
    %p176 = scmp.lt.s32.totalorder %s13, 2
    // Predicated region
    $region29: #{tpu_custom_call.1} parent=5 // pred_check
      %p177 = pneg %p176
    $region30: #{tpu_custom_call.1} parent=5 // pred_check_branch
      %179 = sbr.rel (%p177) target = $region32
    $region31: #{tpu_custom_call.1} parent=5 // pred_region
      // Predicated region
      $region33: #{tpu_custom_call.1} parent=31 // pred_check
        %p180 = pneg %p33
      $region34: #{tpu_custom_call.1} parent=31 // pred_check_branch
        %182 = sbr.rel (%p180) target = $region36
      $region35: #{tpu_custom_call.1} parent=31 // pred_region
        %s183 = smul.u32 16, %s13
        %p184 = scmp.lt.s32.totalorder %s183, 31
        %s185 = scalar_select %p184, %s183, 31
        %s186 = smul.addr %s185, 8
        %s187 = scalar_lea.vmem %s0, %s186
        %s188 = smul.u32 16, %s13
      $region36: #{tpu_custom_call.1} parent=31 // pred_fallthru
        _
    $region32: #{tpu_custom_call.1} parent=5 // pred_fallthru
      _
    %p189 = scmp.le.s32.totalorder 1, %s13
    %p190 = scmp.lt.s32.totalorder %s13, 3
    %p191 = pnand %p189, %p190
    %p192 = pneg %p191
    // Predicated region
    $region37: #{tpu_custom_call.1} parent=5 // pred_check
      _
    $region38: #{tpu_custom_call.1} parent=5 // pred_check_branch
      %194 = sbr.rel (%p191) target = $region40
    $region39: #{tpu_custom_call.1} parent=5 // pred_region
      %s195 = ssub.s32 %s13, 1
      %s196 = smul.u32 16, %s18
      %p197 = scmp.lt.s32.totalorder %s196, 31
      %s198 = scalar_select %p197, %s196, 31
      %s199 = smul.addr %s198, 8
      %s200 = scalar_lea.vmem %s0, %s199
      %p201 = pneg %p39
      %p202 = pneg %p36
      %p203 = pneg %p60
      %p204 = pneg %p57
      %p205 = pneg %p81
      %p206 = pneg %p78
      %p207 = pneg %p102
      %p208 = pneg %p99
      %p209 = pneg %p123
      %p210 = pneg %p120
      %p211 = pneg %p149
      %p212 = pneg %p146
      %s213 = smul.u32 16, %s18
      %p214 = scmp.lt.s32.totalorder %s213, 31
      %s215 = scalar_select %p214, %s213, 31
      %s216 = smul.addr %s215, 8
      %s217 = scalar_lea.vmem %s5, %s216
      %s218 = smul.u32 16, %s18
      %p219 = scmp.lt.s32.totalorder %s218, 31
      %s220 = scalar_select %p219, %s218, 31
      %s221 = smul.addr %s220, 8
      %s222 = scalar_lea.vmem %s0, %s221
      %s223 = smul.u32 16, %s18
      %s224 = smul.u32 16, %s18
      %p225 = scmp.lt.s32.totalorder %s224, 31
      %s226 = scalar_select %p225, %s224, 31
      %s227 = smul.addr %s226, 8
      %s228 = scalar_lea.vmem %s5, %s227
      %s229 = smul.u32 16, %s18
      %v230 = vld [vmem:[%s222] sm:$0xff]
      %v231 = vld [vmem:[%s222 + $0x8] sm:$0xff]
      %v232 = vld [vmem:[%s222 + $0x10] sm:$0xff]
      %v233 = vld [vmem:[%s222 + $0x18] sm:$0xff]
      %v234 = vld [vmem:[%s222 + $0x20] sm:$0xff]
      %v235 = vld [vmem:[%s222 + $0x28] sm:$0xff]
      %v236 = vld [vmem:[%s222 + $0x30] sm:$0xff]
      %v237 = vld [vmem:[%s222 + $0x38] sm:$0xff]
      %v238 = vld [vmem:[%s222 + $0x40] sm:$0xff]
      %v239 = vld [vmem:[%s222 + $0x48] sm:$0xff]
      %v240 = vld [vmem:[%s222 + $0x50] sm:$0xff]
      %v241 = vld [vmem:[%s222 + $0x58] sm:$0xff]
      %v242 = vld [vmem:[%s222 + $0x60] sm:$0xff]
      %v243 = vld [vmem:[%s222 + $0x68] sm:$0xff]
      %v244 = vld [vmem:[%s222 + $0x70] sm:$0xff]
      %v245 = vld [vmem:[%s222 + $0x78] sm:$0xff]
      %v246 = vld [vmem:[%s1] sm:$0xff]
      %v247 = vld [vmem:[%s1 + $0x8] sm:$0xff]
      %v248 = vld [vmem:[%s1 + $0x10] sm:$0xff]
      %v249 = vld [vmem:[%s1 + $0x18] sm:$0xff]
      %v250 = vld [vmem:[%s2] sm:$0x1]
      %v252 = vlaneseq
      %v253 = vshrl.u32 %v252, 7
      %v254 = vsub.s32 0, %v253
      %v255 = vrot.slane %v250, %v254
      %vm257 = vcmask 261120
      %v259 = vsel %vm257, %v230, 0
      %v262 = vsel %vm257, %v231, 0
      %v265 = vsel %vm257, %v232, 0
      %v268 = vsel %vm257, %v233, 0
      %v271 = vsel %vm257, %v234, 0
      %v274 = vsel %vm257, %v235, 0
      %v277 = vsel %vm257, %v236, 0
      %v280 = vsel %vm257, %v237, 0
      %v283 = vsel %vm257, %v238, 0
      %v286 = vsel %vm257, %v239, 0
      %v289 = vsel %vm257, %v240, 0
      %v292 = vsel %vm257, %v241, 0
      %v295 = vsel %vm257, %v242, 0
      %v298 = vsel %vm257, %v243, 0
      %v301 = vsel %vm257, %v244, 0
      %v304 = vsel %vm257, %v245, 0
      %306 = vmatprep.subr.mxu0 0.0
      %307 = vmatpush1.msra.mxu0 %v246
      %308 = vmatprep.subr.mxu0 0.0
      %309 = vmatpush1.msra.mxu0 %v247
      %310 = vmatprep.subr.mxu0 0.0
      %311 = vmatpush1.msra.mxu0 %v248
      %312 = vmatprep.subr.mxu0 0.0
      %313 = vmatpush1.msra.mxu0 %v249
      %314 = vmatprep.subr.mxu0 0.0
      %315 = vmatpush1.msra.mxu0 0.0
      %316 = vmatprep.subr.mxu0 0.0
      %317 = vmatpush1.msra.mxu0 0.0
      %318 = vmatprep.subr.mxu0 0.0
      %319 = vmatpush1.msra.mxu0 0.0
      %320 = vmatprep.subr.mxu0 0.0
      %321 = vmatpush1.msra.mxu0 0.0
      %322 = vmatprep.subr.mxu0 0.0
      %323 = vmatpush1.msra.mxu0 0.0
      %324 = vmatprep.subr.mxu0 0.0
      %325 = vmatpush1.msra.mxu0 0.0
      %326 = vmatprep.subr.mxu0 0.0
      %327 = vmatpush1.msra.mxu0 0.0
      %328 = vmatprep.subr.mxu0 0.0
      %329 = vmatpush1.msra.mxu0 0.0
      %330 = vmatprep.subr.mxu0 0.0
      %331 = vmatpush1.msra.mxu0 0.0
      %332 = vmatprep.subr.mxu0 0.0
      %333 = vmatpush1.msra.mxu0 0.0
      %334 = vmatprep.subr.mxu0 0.0
      %335 = vmatpush1.msra.mxu0 0.0
      %336 = vmatprep.subr.mxu0 0.0
      %337 = vmatpush1.msra.mxu0 0.0
      %338 = vmatprep.subr.mxu0 0.0
      %339 = vmatpush1.msra.mxu0 0.0
      %340 = vmatprep.subr.mxu0 0.0
      %341 = vmatpush1.msra.mxu0 0.0
      %342 = vmatprep.subr.mxu0 0.0
      %343 = vmatpush1.msra.mxu0 0.0
      %344 = vmatprep.subr.mxu0 0.0
      %345 = vmatpush1.msra.mxu0 0.0
      %346 = vmatprep.subr.mxu0 0.0
      %347 = vmatpush1.msra.mxu0 0.0
      %348 = vmatprep.subr.mxu0 0.0
      %349 = vmatpush1.msra.mxu0 0.0
      %350 = vmatprep.subr.mxu0 0.0
      %351 = vmatpush1.msra.mxu0 0.0
      %352 = vmatprep.subr.mxu0 0.0
      %353 = vmatpush1.msra.mxu0 0.0
      %354 = vmatprep.subr.mxu0 0.0
      %355 = vmatpush1.msra.mxu0 0.0
      %356 = vmatprep.subr.mxu0 0.0
      %357 = vmatpush1.msra.mxu0 0.0
      %358 = vmatprep.subr.mxu0 0.0
      %359 = vmatpush1.msra.mxu0 0.0
      %360 = vmatprep.subr.mxu0 0.0
      %361 = vmatpush1.msra.mxu0 0.0
      %362 = vmatprep.subr.mxu0 0.0
      %363 = vmatpush1.msra.mxu0 0.0
      %364 = vmatprep.subr.mxu0 0.0
      %365 = vmatpush1.msra.mxu0 0.0
      %366 = vmatprep.subr.mxu0 0.0
      %367 = vmatpush1.msra.mxu0 0.0
      %368 = vmatprep.subr.mxu0 0.0
      %369 = vmatpush1.msra.mxu0 0.0
      %370 = vmatprep.mubr.f32.mxu0 0.0
      %371 = vmatmul.mubr.f32.gmra.mrb[0].mxu0 %v259
      %v372 = vpop.f32.mrb[0].mxu0
      %v373 = vadd.f32 %v255, %v372
      %v374 = vpop.f32.mrb[0].mxu0
      %375 = vmatprep.mubr.f32.mxu0 0.0
      %376 = vmatmul.mubr.f32.gmra.mrb[0].mxu0 %v262
      %v377 = vpop.f32.mrb[0].mxu0
      %v378 = vadd.f32 %v255, %v377
      %v379 = vpop.f32.mrb[0].mxu0
      %380 = vmatprep.mubr.f32.mxu0 0.0
      %381 = vmatmul.mubr.f32.gmra.mrb[0].mxu0 %v265
      %v382 = vpop.f32.mrb[0].mxu0
      %v383 = vadd.f32 %v255, %v382
      %v384 = vpop.f32.mrb[0].mxu0
      %385 = vmatprep.mubr.f32.mxu0 0.0
      %386 = vmatmul.mubr.f32.gmra.mrb[0].mxu0 %v268
      %v387 = vpop.f32.mrb[0].mxu0
      %v388 = vadd.f32 %v255, %v387
      %v389 = vpop.f32.mrb[0].mxu0
      %390 = vmatprep.mubr.f32.mxu0 0.0
      %391 = vmatmul.mubr.f32.gmra.mrb[0].mxu0 %v271
      %v392 = vpop.f32.mrb[0].mxu0
      %v393 = vadd.f32 %v255, %v392
      %v394 = vpop.f32.mrb[0].mxu0
      %395 = vmatprep.mubr.f32.mxu0 0.0
      %396 = vmatmul.mubr.f32.gmra.mrb[0].mxu0 %v274
      %v397 = vpop.f32.mrb[0].mxu0
      %v398 = vadd.f32 %v255, %v397
      %v399 = vpop.f32.mrb[0].mxu0
      %400 = vmatprep.mubr.f32.mxu0 0.0
      %401 = vmatmul.mubr.f32.gmra.mrb[0].mxu0 %v277
      %v402 = vpop.f32.mrb[0].mxu0
      %v403 = vadd.f32 %v255, %v402
      %v404 = vpop.f32.mrb[0].mxu0
      %405 = vmatprep.mubr.f32.mxu0 0.0
      %406 = vmatmul.mubr.f32.gmra.mrb[0].mxu0 %v280
      %v407 = vpop.f32.mrb[0].mxu0
      %v408 = vadd.f32 %v255, %v407
      %v409 = vpop.f32.mrb[0].mxu0
      %410 = vmatprep.mubr.f32.mxu0 0.0
      %411 = vmatmul.mubr.f32.gmra.mrb[0].mxu0 %v283
      %v412 = vpop.f32.mrb[0].mxu0
      %v413 = vadd.f32 %v255, %v412
      %v414 = vpop.f32.mrb[0].mxu0
      %415 = vmatprep.mubr.f32.mxu0 0.0
      %416 = vmatmul.mubr.f32.gmra.mrb[0].mxu0 %v286
      %v417 = vpop.f32.mrb[0].mxu0
      %v418 = vadd.f32 %v255, %v417
      %v419 = vpop.f32.mrb[0].mxu0
      %420 = vmatprep.mubr.f32.mxu0 0.0
      %421 = vmatmul.mubr.f32.gmra.mrb[0].mxu0 %v289
      %v422 = vpop.f32.mrb[0].mxu0
      %v423 = vadd.f32 %v255, %v422
      %v424 = vpop.f32.mrb[0].mxu0
      %425 = vmatprep.mubr.f32.mxu0 0.0
      %426 = vmatmul.mubr.f32.gmra.mrb[0].mxu0 %v292
      %v427 = vpop.f32.mrb[0].mxu0
      %v428 = vadd.f32 %v255, %v427
      %v429 = vpop.f32.mrb[0].mxu0
      %430 = vmatprep.mubr.f32.mxu0 0.0
      %431 = vmatmul.mubr.f32.gmra.mrb[0].mxu0 %v295
      %v432 = vpop.f32.mrb[0].mxu0
      %v433 = vadd.f32 %v255, %v432
      %v434 = vpop.f32.mrb[0].mxu0
      %435 = vmatprep.mubr.f32.mxu0 0.0
      %436 = vmatmul.mubr.f32.gmra.mrb[0].mxu0 %v298
      %v437 = vpop.f32.mrb[0].mxu0
      %v438 = vadd.f32 %v255, %v437
      %v439 = vpop.f32.mrb[0].mxu0
      %440 = vmatprep.mubr.f32.mxu0 0.0
      %441 = vmatmul.mubr.f32.gmra.mrb[0].mxu0 %v301
      %v442 = vpop.f32.mrb[0].mxu0
      %v443 = vadd.f32 %v255, %v442
      %v444 = vpop.f32.mrb[0].mxu0
      %445 = vmatprep.mubr.f32.mxu0 0.0
      %446 = vmatmul.mubr.f32.gmra.mrb[0].mxu0 %v304
      %v447 = vpop.f32.mrb[0].mxu0
      %v448 = vadd.f32 %v255, %v447
      %v449 = vpop.f32.mrb[0].mxu0
      %450 = vdwg.mxu0
      %v451 = vmax.f32 %v373, 0.0
      %v452 = vmax.f32 %v378, 0.0
      %v453 = vmax.f32 %v383, 0.0
      %v454 = vmax.f32 %v388, 0.0
      %v455 = vmax.f32 %v393, 0.0
      %v456 = vmax.f32 %v398, 0.0
      %v457 = vmax.f32 %v403, 0.0
      %v458 = vmax.f32 %v408, 0.0
      %v459 = vmax.f32 %v413, 0.0
      %v460 = vmax.f32 %v418, 0.0
      %v461 = vmax.f32 %v423, 0.0
      %v462 = vmax.f32 %v428, 0.0
      %v463 = vmax.f32 %v433, 0.0
      %v464 = vmax.f32 %v438, 0.0
      %v465 = vmax.f32 %v443, 0.0
      %v466 = vmax.f32 %v448, 0.0
      %v467 = vld [vmem:[%s3] sm:$0xff]
      %v468 = vld [vmem:[%s3 + $0x8] sm:$0xff]
      %v469 = vld [vmem:[%s3 + $0x10] sm:$0xff]
      %v470 = vld [vmem:[%s3 + $0x18] sm:$0xff]
      %v471 = vld [vmem:[%s3 + $0x20] sm:$0xff]
      %v472 = vld [vmem:[%s3 + $0x28] sm:$0xff]
      %v473 = vld [vmem:[%s3 + $0x30] sm:$0xff]
      %v474 = vld [vmem:[%s3 + $0x38] sm:$0xff]
      %v475 = vld [vmem:[%s3 + $0x40] sm:$0xff]
      %v476 = vld [vmem:[%s3 + $0x48] sm:$0xff]
      %v477 = vld [vmem:[%s3 + $0x50] sm:$0xff]
      %v478 = vld [vmem:[%s3 + $0x58] sm:$0xff]
      %v479 = vld [vmem:[%s3 + $0x60] sm:$0xff]
      %v480 = vld [vmem:[%s3 + $0x68] sm:$0xff]
      %v481 = vld [vmem:[%s3 + $0x70] sm:$0xff]
      %v482 = vld [vmem:[%s3 + $0x78] sm:$0xff]
      %v483 = vld [vmem:[#allocation2] sm:$0x1]
      %v485 = vlaneseq
      %v486 = vshrl.u32 %v485, 7
      %v487 = vsub.s32 0, %v486
      %v488 = vrot.slane %v483, %v487
      %490 = vmatprep.subr.mxu0 0.0
      %491 = vmatpush1.msra.mxu0 %v467
      %492 = vmatprep.subr.mxu0 0.0
      %493 = vmatpush1.msra.mxu0 %v468
      %494 = vmatprep.subr.mxu0 0.0
      %495 = vmatpush1.msra.mxu0 %v469
      %496 = vmatprep.subr.mxu0 0.0
      %497 = vmatpush1.msra.mxu0 %v470
      %498 = vmatprep.subr.mxu0 0.0
      %499 = vmatpush1.msra.mxu0 %v471
      %500 = vmatprep.subr.mxu0 0.0
      %501 = vmatpush1.msra.mxu0 %v472
      %502 = vmatprep.subr.mxu0 0.0
      %503 = vmatpush1.msra.mxu0 %v473
      %504 = vmatprep.subr.mxu0 0.0
      %505 = vmatpush1.msra.mxu0 %v474
      %506 = vmatprep.subr.mxu0 0.0
      %507 = vmatpush1.msra.mxu0 %v475
      %508 = vmatprep.subr.mxu0 0.0
      %509 = vmatpush1.msra.mxu0 %v476
      %510 = vmatprep.subr.mxu0 0.0
      %511 = vmatpush1.msra.mxu0 %v477
      %512 = vmatprep.subr.mxu0 0.0
      %513 = vmatpush1.msra.mxu0 %v478
      %514 = vmatprep.subr.mxu0 0.0
      %515 = vmatpush1.msra.mxu0 %v479
      %516 = vmatprep.subr.mxu0 0.0
      %517 = vmatpush1.msra.mxu0 %v480
      %518 = vmatprep.subr.mxu0 0.0
      %519 = vmatpush1.msra.mxu0 %v481
      %520 = vmatprep.subr.mxu0 0.0
      %521 = vmatpush1.msra.mxu0 %v482
      %522 = vmatprep.subr.mxu0 0.0
      %523 = vmatpush1.msra.mxu0 0.0
      %524 = vmatprep.subr.mxu0 0.0
      %525 = vmatpush1.msra.mxu0 0.0
      %526 = vmatprep.subr.mxu0 0.0
      %527 = vmatpush1.msra.mxu0 0.0
      %528 = vmatprep.subr.mxu0 0.0
      %529 = vmatpush1.msra.mxu0 0.0
      %530 = vmatprep.subr.mxu0 0.0
      %531 = vmatpush1.msra.mxu0 0.0
      %532 = vmatprep.subr.mxu0 0.0
      %533 = vmatpush1.msra.mxu0 0.0
      %534 = vmatprep.subr.mxu0 0.0
      %535 = vmatpush1.msra.mxu0 0.0
      %536 = vmatprep.subr.mxu0 0.0
      %537 = vmatpush1.msra.mxu0 0.0
      %538 = vmatprep.subr.mxu0 0.0
      %539 = vmatpush1.msra.mxu0 0.0
      %540 = vmatprep.subr.mxu0 0.0
      %541 = vmatpush1.msra.mxu0 0.0
      %542 = vmatprep.subr.mxu0 0.0
      %543 = vmatpush1.msra.mxu0 0.0
      %544 = vmatprep.subr.mxu0 0.0
      %545 = vmatpush1.msra.mxu0 0.0
      %546 = vmatprep.subr.mxu0 0.0
      %547 = vmatpush1.msra.mxu0 0.0
      %548 = vmatprep.subr.mxu0 0.0
      %549 = vmatpush1.msra.mxu0 0.0
      %550 = vmatprep.subr.mxu0 0.0
      %551 = vmatpush1.msra.mxu0 0.0
      %552 = vmatprep.subr.mxu0 0.0
      %553 = vmatpush1.msra.mxu0 0.0
      %554 = vmatprep.mubr.f32.mxu0 0.0
      %555 = vmatmul.mubr.f32.gmra.mrb[0].mxu0 %v451
      %v556 = vpop.f32.mrb[0].mxu0
      %v557 = vadd.f32 %v488, %v556
      %v558 = vpop.f32.mrb[0].mxu0
      %559 = vmatprep.mubr.f32.mxu0 0.0
      %560 = vmatmul.mubr.f32.gmra.mrb[0].mxu0 %v452
      %v561 = vpop.f32.mrb[0].mxu0
      %v562 = vadd.f32 %v488, %v561
      %v563 = vpop.f32.mrb[0].mxu0
      %564 = vmatprep.mubr.f32.mxu0 0.0
      %565 = vmatmul.mubr.f32.gmra.mrb[0].mxu0 %v453
      %v566 = vpop.f32.mrb[0].mxu0
      %v567 = vadd.f32 %v488, %v566
      %v568 = vpop.f32.mrb[0].mxu0
      %569 = vmatprep.mubr.f32.mxu0 0.0
      %570 = vmatmul.mubr.f32.gmra.mrb[0].mxu0 %v454
      %v571 = vpop.f32.mrb[0].mxu0
      %v572 = vadd.f32 %v488, %v571
      %v573 = vpop.f32.mrb[0].mxu0
      %574 = vmatprep.mubr.f32.mxu0 0.0
      %575 = vmatmul.mubr.f32.gmra.mrb[0].mxu0 %v455
      %v576 = vpop.f32.mrb[0].mxu0
      %v577 = vadd.f32 %v488, %v576
      %v578 = vpop.f32.mrb[0].mxu0
      %579 = vmatprep.mubr.f32.mxu0 0.0
      %580 = vmatmul.mubr.f32.gmra.mrb[0].mxu0 %v456
      %v581 = vpop.f32.mrb[0].mxu0
      %v582 = vadd.f32 %v488, %v581
      %v583 = vpop.f32.mrb[0].mxu0
      %584 = vmatprep.mubr.f32.mxu0 0.0
      %585 = vmatmul.mubr.f32.gmra.mrb[0].mxu0 %v457
      %v586 = vpop.f32.mrb[0].mxu0
      %v587 = vadd.f32 %v488, %v586
      %v588 = vpop.f32.mrb[0].mxu0
      %589 = vmatprep.mubr.f32.mxu0 0.0
      %590 = vmatmul.mubr.f32.gmra.mrb[0].mxu0 %v458
      %v591 = vpop.f32.mrb[0].mxu0
      %v592 = vadd.f32 %v488, %v591
      %v593 = vpop.f32.mrb[0].mxu0
      %594 = vmatprep.mubr.f32.mxu0 0.0
      %595 = vmatmul.mubr.f32.gmra.mrb[0].mxu0 %v459
      %v596 = vpop.f32.mrb[0].mxu0
      %v597 = vadd.f32 %v488, %v596
      %v598 = vpop.f32.mrb[0].mxu0
      %599 = vmatprep.mubr.f32.mxu0 0.0
      %600 = vmatmul.mubr.f32.gmra.mrb[0].mxu0 %v460
      %v601 = vpop.f32.mrb[0].mxu0
      %v602 = vadd.f32 %v488, %v601
      %v603 = vpop.f32.mrb[0].mxu0
      %604 = vmatprep.mubr.f32.mxu0 0.0
      %605 = vmatmul.mubr.f32.gmra.mrb[0].mxu0 %v461
      %v606 = vpop.f32.mrb[0].mxu0
      %v607 = vadd.f32 %v488, %v606
      %v608 = vpop.f32.mrb[0].mxu0
      %609 = vmatprep.mubr.f32.mxu0 0.0
      %610 = vmatmul.mubr.f32.gmra.mrb[0].mxu0 %v462
      %v611 = vpop.f32.mrb[0].mxu0
      %v612 = vadd.f32 %v488, %v611
      %v613 = vpop.f32.mrb[0].mxu0
      %614 = vmatprep.mubr.f32.mxu0 0.0
      %615 = vmatmul.mubr.f32.gmra.mrb[0].mxu0 %v463
      %v616 = vpop.f32.mrb[0].mxu0
      %v617 = vadd.f32 %v488, %v616
      %v618 = vpop.f32.mrb[0].mxu0
      %619 = vmatprep.mubr.f32.mxu0 0.0
      %620 = vmatmul.mubr.f32.gmra.mrb[0].mxu0 %v464
      %v621 = vpop.f32.mrb[0].mxu0
      %v622 = vadd.f32 %v488, %v621
      %v623 = vpop.f32.mrb[0].mxu0
      %624 = vmatprep.mubr.f32.mxu0 0.0
      %625 = vmatmul.mubr.f32.gmra.mrb[0].mxu0 %v465
      %v626 = vpop.f32.mrb[0].mxu0
      %v627 = vadd.f32 %v488, %v626
      %v628 = vpop.f32.mrb[0].mxu0
      %629 = vmatprep.mubr.f32.mxu0 0.0
      %630 = vmatmul.mubr.f32.gmra.mrb[0].mxu0 %v466
      %v631 = vpop.f32.mrb[0].mxu0
      %v632 = vadd.f32 %v488, %v631
      %v633 = vpop.f32.mrb[0].mxu0
      %634 = vdwg.mxu0
      %v635 = vsub.f32 0.0, %v557
      %v636 = vsub.f32 0.0, %v562
      %v637 = vsub.f32 0.0, %v567
      %v638 = vsub.f32 0.0, %v572
      %v639 = vsub.f32 0.0, %v577
      %v640 = vsub.f32 0.0, %v582
      %v641 = vsub.f32 0.0, %v587
      %v642 = vsub.f32 0.0, %v592
      %v643 = vsub.f32 0.0, %v597
      %v644 = vsub.f32 0.0, %v602
      %v645 = vsub.f32 0.0, %v607
      %v646 = vsub.f32 0.0, %v612
      %v647 = vsub.f32 0.0, %v617
      %v648 = vsub.f32 0.0, %v622
      %v649 = vsub.f32 0.0, %v627
      %v650 = vsub.f32 0.0, %v632
      %v651 = vmul.f32 %v635, 1.442695
      %v652 = vpow.pop %v651
      %v653 = vmul.f32 %v636, 1.442695
      %v654 = vpow.pop %v653
      %v655 = vmul.f32 %v637, 1.442695
      %v656 = vpow.pop %v655
      %v657 = vmul.f32 %v638, 1.442695
      %v658 = vpow.pop %v657
      %v659 = vmul.f32 %v639, 1.442695
      %v660 = vpow.pop %v659
      %v661 = vmul.f32 %v640, 1.442695
      %v662 = vpow.pop %v661
      %v663 = vmul.f32 %v641, 1.442695
      %v664 = vpow.pop %v663
      %v665 = vmul.f32 %v642, 1.442695
      %v666 = vpow.pop %v665
      %v667 = vmul.f32 %v643, 1.442695
      %v668 = vpow.pop %v667
      %v669 = vmul.f32 %v644, 1.442695
      %v670 = vpow.pop %v669
      %v671 = vmul.f32 %v645, 1.442695
      %v672 = vpow.pop %v671
      %v673 = vmul.f32 %v646, 1.442695
      %v674 = vpow.pop %v673
      %v675 = vmul.f32 %v647, 1.442695
      %v676 = vpow.pop %v675
      %v677 = vmul.f32 %v648, 1.442695
      %v678 = vpow.pop %v677
      %v679 = vmul.f32 %v649, 1.442695
      %v680 = vpow.pop %v679
      %v681 = vmul.f32 %v650, 1.442695
      %v682 = vpow.pop %v681
      %v683 = vadd.f32 %v652, 1.0
      %v684 = vadd.f32 %v654, 1.0
      %v685 = vadd.f32 %v656, 1.0
      %v686 = vadd.f32 %v658, 1.0
      %v687 = vadd.f32 %v660, 1.0
      %v688 = vadd.f32 %v662, 1.0
      %v689 = vadd.f32 %v664, 1.0
      %v690 = vadd.f32 %v666, 1.0
      %v691 = vadd.f32 %v668, 1.0
      %v692 = vadd.f32 %v670, 1.0
      %v693 = vadd.f32 %v672, 1.0
      %v694 = vadd.f32 %v674, 1.0
      %v695 = vadd.f32 %v676, 1.0
      %v696 = vadd.f32 %v678, 1.0
      %v697 = vadd.f32 %v680, 1.0
      %v698 = vadd.f32 %v682, 1.0
      %v699 = vrcp.pop %v683
      %v700 = vmul.f32 1.0, %v699
      %v701 = vrcp.pop %v684
      %v702 = vmul.f32 1.0, %v701
      %v703 = vrcp.pop %v685
      %v704 = vmul.f32 1.0, %v703
      %v705 = vrcp.pop %v686
      %v706 = vmul.f32 1.0, %v705
      %v707 = vrcp.pop %v687
      %v708 = vmul.f32 1.0, %v707
      %v709 = vrcp.pop %v688
      %v710 = vmul.f32 1.0, %v709
      %v711 = vrcp.pop %v689
      %v712 = vmul.f32 1.0, %v711
      %v713 = vrcp.pop %v690
      %v714 = vmul.f32 1.0, %v713
      %v715 = vrcp.pop %v691
      %v716 = vmul.f32 1.0, %v715
      %v717 = vrcp.pop %v692
      %v718 = vmul.f32 1.0, %v717
      %v719 = vrcp.pop %v693
      %v720 = vmul.f32 1.0, %v719
      %v721 = vrcp.pop %v694
      %v722 = vmul.f32 1.0, %v721
      %v723 = vrcp.pop %v695
      %v724 = vmul.f32 1.0, %v723
      %v725 = vrcp.pop %v696
      %v726 = vmul.f32 1.0, %v725
      %v727 = vrcp.pop %v697
      %v728 = vmul.f32 1.0, %v727
      %v729 = vrcp.pop %v698
      %v730 = vmul.f32 1.0, %v729
      %vm731 = vcmask 7168
      %732 = vst.msk [vmem:[%s228] sm:$0xff] %vm731, %v700
      %733 = vst.msk [vmem:[%s228 + $0x8] sm:$0xff] %vm731, %v702
      %734 = vst.msk [vmem:[%s228 + $0x10] sm:$0xff] %vm731, %v704
      %735 = vst.msk [vmem:[%s228 + $0x18] sm:$0xff] %vm731, %v706
      %736 = vst.msk [vmem:[%s228 + $0x20] sm:$0xff] %vm731, %v708
      %737 = vst.msk [vmem:[%s228 + $0x28] sm:$0xff] %vm731, %v710
      %738 = vst.msk [vmem:[%s228 + $0x30] sm:$0xff] %vm731, %v712
      %739 = vst.msk [vmem:[%s228 + $0x38] sm:$0xff] %vm731, %v714
      %740 = vst.msk [vmem:[%s228 + $0x40] sm:$0xff] %vm731, %v716
      %741 = vst.msk [vmem:[%s228 + $0x48] sm:$0xff] %vm731, %v718
      %742 = vst.msk [vmem:[%s228 + $0x50] sm:$0xff] %vm731, %v720
      %743 = vst.msk [vmem:[%s228 + $0x58] sm:$0xff] %vm731, %v722
      %744 = vst.msk [vmem:[%s228 + $0x60] sm:$0xff] %vm731, %v724
      %745 = vst.msk [vmem:[%s228 + $0x68] sm:$0xff] %vm731, %v726
      %746 = vst.msk [vmem:[%s228 + $0x70] sm:$0xff] %vm731, %v728
      %747 = vst.msk [vmem:[%s228 + $0x78] sm:$0xff] %vm731, %v730
      %s748 = smul.u32 16, %s18
      %p749 = scmp.lt.s32.totalorder %s748, 31
      %s750 = scalar_select %p749, %s748, 31
      %s751 = smul.addr %s750, 8
      %s752 = scalar_lea.vmem %s5, %s751
      // Predicated region
      $region41: #{tpu_custom_call.1} parent=39 // pred_check
        %p753 = pneg %p146
      $region42: #{tpu_custom_call.1} parent=39 // pred_check_branch
        %755 = sbr.rel (%p753) target = $region44
      $region43: #{tpu_custom_call.1} parent=39 // pred_region
        %s756 = smul.u32 16, %s18
      $region44: #{tpu_custom_call.1} parent=39 // pred_fallthru
        _
    $region40: #{tpu_custom_call.1} parent=5 // pred_fallthru
      _
    %p757 = scmp.le.s32.totalorder 2, %s13
    // Predicated region
    $region45: #{tpu_custom_call.1} parent=5 // pred_check
      %p758 = pneg %p757
    $region46: #{tpu_custom_call.1} parent=5 // pred_check_branch
      %760 = sbr.rel (%p758) target = $region48
    $region47: #{tpu_custom_call.1} parent=5 // pred_region
      %s761 = ssub.s32 %s13, 2
      // Predicated region
      $region49: #{tpu_custom_call.1} parent=47 // pred_check
        %p762 = pneg %p152
      $region50: #{tpu_custom_call.1} parent=47 // pred_check_branch
        %764 = sbr.rel (%p762) target = $region52
      $region51: #{tpu_custom_call.1} parent=47 // pred_region
        %s765 = smul.u32 16, %s19
        %p766 = scmp.lt.s32.totalorder %s765, 31
        %s767 = scalar_select %p766, %s765, 31
        %s768 = smul.addr %s767, 8
        %s769 = scalar_lea.vmem %s5, %s768
      $region52: #{tpu_custom_call.1} parent=47 // pred_fallthru
        _
    $region48: #{tpu_custom_call.1} parent=5 // pred_fallthru
      _
  $region6: #{tpu_custom_call.1} parent=0 // loop_footer
    %s17 = sadd.s32 1, %s13
  $region7: #{tpu_custom_call.1} parent=0 // loop_footer_branch
    %12 = sbr.rel target = $region3
  $region8: #{tpu_custom_call.1} parent=0 // loop_exit
    _

</llo_original>
